<compile_context>
chip_gen: v7x
topology: tpu7x:2x2x1
jax: 0.10.0
libtpu: 0.0.40
codegen_flags: <defaults>
</compile_context>

<pallas_src>
import jax
import jax.numpy as jnp
from jax.experimental import pallas as pl
from jax.experimental.pallas import tpu as pltpu

NUM_PLAYERS = 10
PER_PLAYER_FEATURES = 15
HISTORY = 10
NUM_TEAMS = 2
INPUT_SIZE = NUM_PLAYERS * PER_PLAYER_FEATURES * HISTORY * NUM_TEAMS + 1  # 3001

_LANE = 128
_MAX_BLOCK = 2048  # lanes per grid step; (2, 2048) f32 out + few (1, 2048) temps << VMEM


def _erfinv_f32(x):
    """Giles (2010) single-precision inverse error function (|x| < 1)."""
    w = -jnp.log((1.0 - x) * (1.0 + x))

    ws = w - 2.5
    p1 = jnp.float32(2.81022636e-08)
    p1 = jnp.float32(3.43273939e-07) + p1 * ws
    p1 = jnp.float32(-3.5233877e-06) + p1 * ws
    p1 = jnp.float32(-4.39150654e-06) + p1 * ws
    p1 = jnp.float32(0.00021858087) + p1 * ws
    p1 = jnp.float32(-0.00125372503) + p1 * ws
    p1 = jnp.float32(-0.00417768164) + p1 * ws
    p1 = jnp.float32(0.246640727) + p1 * ws
    p1 = jnp.float32(1.50140941) + p1 * ws

    wb = jnp.sqrt(w) - 3.0
    p2 = jnp.float32(-0.000200214257)
    p2 = jnp.float32(0.000100950558) + p2 * wb
    p2 = jnp.float32(0.00134934322) + p2 * wb
    p2 = jnp.float32(-0.00367342844) + p2 * wb
    p2 = jnp.float32(0.00573950773) + p2 * wb
    p2 = jnp.float32(-0.0076224613) + p2 * wb
    p2 = jnp.float32(0.00943887047) + p2 * wb
    p2 = jnp.float32(1.00167406) + p2 * wb
    p2 = jnp.float32(2.83297682) + p2 * wb

    return jnp.where(w < 5.0, p1, p2) * x


def _random_baseline_kernel(seed_ref, out_ref):
    # seed_ref: SMEM (1,) int32 scalar seed
    # out_ref : VMEM (2, block) float32 -- row 0 = win uniform, row 1 = duration
    block = out_ref.shape[1]
    pid = pl.program_id(0)
    seed_u = seed_ref[0].astype(jnp.uint32)

    # Global batch index on the lane axis (unique across grid blocks).
    lane = jax.lax.broadcasted_iota(jnp.int32, (1, block), 1).astype(jnp.uint32)
    gidx = lane + (pid * block).astype(jnp.uint32)

    def _mix(v):
        # splitmix32-style 32-bit finalizer (uint32, wrapping arithmetic).
        v = v ^ (v >> 16)
        v = v * jnp.uint32(0x7FEB352D)
        v = v ^ (v >> 15)
        v = v * jnp.uint32(0x846CA68B)
        v = v ^ (v >> 16)
        return v

    def _bits24(stream):
        # Counter-based hash of (global index, seed, stream id) -> 24 high bits.
        c_stream = jnp.uint32((stream * 0x85EBCA6B) & 0xFFFFFFFF)
        v = gidx * jnp.uint32(0x9E3779B9) + seed_u + c_stream
        v = _mix(v)
        v = _mix(v ^ jnp.uint32(stream))
        return (v >> 8).astype(jnp.int32)  # in [0, 2^24)

    inv24 = jnp.float32(1.0 / (1 << 24))
    inv23 = jnp.float32(1.0 / (1 << 23))

    # win/loss ~ U[0, 1)  (matches torch.rand)
    win = _bits24(0).astype(jnp.float32) * inv24

    # duration ~ N(0, 1) via inverse CDF: z = sqrt(2) * erfinv(x), x in (-1, 1).
    # Symmetric exact mapping keeps |x| <= 1 - 2^-24 (no clamp, no inf/nan).
    bz = _bits24(1).astype(jnp.float32)
    xz = (bz - jnp.float32(8388607.5)) * inv23
    dur = jnp.float32(1.4142135623730951) * _erfinv_f32(xz)

    out_ref[0:1, :] = win
    out_ref[1:2, :] = dur


def random_baseline_forward(x, seed=0):
    """Pallas equivalent of RandomBaselineEndToEndModel.forward(x).

    x's contents are intentionally unused (only x.shape[0] matters), exactly
    like the PyTorch baseline.  Vary `seed` per call for fresh draws.
    """
    batch = int(x.shape[0])

    # Pad batch up to a lane multiple, tile the lane axis with a parallel grid.
    b_pad = -(-batch // _LANE) * _LANE
    block = min(b_pad, _MAX_BLOCK)
    b_pad = -(-b_pad // block) * block
    grid = b_pad // block

    seed_arr = jnp.asarray([seed], dtype=jnp.int32)

    out = pl.pallas_call(
        _random_baseline_kernel,
        out_shape=jax.ShapeDtypeStruct((2, b_pad), jnp.float32),
        grid=(grid,),
        in_specs=[pl.BlockSpec(memory_space=pltpu.MemorySpace.SMEM)],
        out_specs=pl.BlockSpec((2, block), lambda i: (0, i)),
        compiler_params=pltpu.CompilerParams(
            dimension_semantics=("parallel",)),
    )(seed_arr)

    # Tiny wrapper-side transpose/slice: (2, b_pad) -> (batch, 2).
    return out.T[:batch]


if __name__ == "__main__":
    key = jax.random.PRNGKey(0)
    batch = 4
    # Deterministic example input consistent with the module's expected layout.
    x = jax.random.normal(key, (batch, INPUT_SIZE), dtype=jnp.float32)

    out = random_baseline_forward(x, seed=0)
    out = jax.block_until_ready(out)

    assert out.shape == (batch, 2), out.shape
    assert out.dtype == jnp.float32
    # Column 0 must be a valid uniform draw in [0, 1).
    assert bool(jnp.all((out[:, 0] >= 0.0) & (out[:, 0] < 1.0)))
    # Column 1 is a finite normal draw.
    assert bool(jnp.all(jnp.isfinite(out[:, 1])))

    print("KERNEL_OK")
</pallas_src>

<mosaic_0001>
module attributes {stable_mosaic.version = 11 : i64} {
  func.func @_random_baseline_kernel(%arg0: i32, %arg1: memref<1xi32, #tpu.memory_space<smem>>, %arg2: memref<2x128xf32, #tpu.memory_space<vmem>>) attributes {dimension_semantics = [#tpu.dimension_semantics<parallel>], iteration_bounds = array<i64: 1>, scalar_prefetch = 0 : i64, scratch_operands = 0 : i64, tpu.core_type = #tpu.core_type<tc>, window_params = [{transform_indices = @transform_0, window_bounds = array<i64: 1>}, {transform_indices = @transform_1, window_bounds = array<i64: 2, 128>}]} {
    %c0 = arith.constant 0 : index
    %0 = memref.load %arg1[%c0] : memref<1xi32, #tpu.memory_space<smem>>
    %1 = tpu.iota {dimensions = array<i32: 1>} : vector<1x128xi32>
    %c128_i32 = arith.constant 128 : i32
    %2 = arith.muli %arg0, %c128_i32 : i32
    %3 = vector.broadcast %2 : i32 to vector<1x128xi32>
    %4 = arith.addi %1, %3 : vector<1x128xi32>
    %c-1640531527_i32 = arith.constant -1640531527 : i32
    %5 = vector.broadcast %c-1640531527_i32 : i32 to vector<1x128xi32>
    %6 = arith.muli %4, %5 : vector<1x128xi32>
    %7 = vector.broadcast %0 : i32 to vector<1x128xi32>
    %8 = arith.addi %6, %7 : vector<1x128xi32>
    %c0_i32 = arith.constant 0 : i32
    %9 = vector.broadcast %c0_i32 : i32 to vector<1x128xi32>
    %10 = arith.addi %8, %9 : vector<1x128xi32>
    %c16_i32 = arith.constant 16 : i32
    %11 = vector.broadcast %c16_i32 : i32 to vector<1x128xi32>
    %12 = arith.shrui %10, %11 : vector<1x128xi32>
    %13 = arith.xori %10, %12 : vector<1x128xi32>
    %c2146121005_i32 = arith.constant 2146121005 : i32
    %14 = vector.broadcast %c2146121005_i32 : i32 to vector<1x128xi32>
    %15 = arith.muli %13, %14 : vector<1x128xi32>
    %c15_i32 = arith.constant 15 : i32
    %16 = vector.broadcast %c15_i32 : i32 to vector<1x128xi32>
    %17 = arith.shrui %15, %16 : vector<1x128xi32>
    %18 = arith.xori %15, %17 : vector<1x128xi32>
    %c-2073254261_i32 = arith.constant -2073254261 : i32
    %19 = vector.broadcast %c-2073254261_i32 : i32 to vector<1x128xi32>
    %20 = arith.muli %18, %19 : vector<1x128xi32>
    %c16_i32_0 = arith.constant 16 : i32
    %21 = vector.broadcast %c16_i32_0 : i32 to vector<1x128xi32>
    %22 = arith.shrui %20, %21 : vector<1x128xi32>
    %23 = arith.xori %20, %22 : vector<1x128xi32>
    %c0_i32_1 = arith.constant 0 : i32
    %24 = vector.broadcast %c0_i32_1 : i32 to vector<1x128xi32>
    %25 = arith.xori %23, %24 : vector<1x128xi32>
    %c16_i32_2 = arith.constant 16 : i32
    %26 = vector.broadcast %c16_i32_2 : i32 to vector<1x128xi32>
    %27 = arith.shrui %25, %26 : vector<1x128xi32>
    %28 = arith.xori %25, %27 : vector<1x128xi32>
    %c2146121005_i32_3 = arith.constant 2146121005 : i32
    %29 = vector.broadcast %c2146121005_i32_3 : i32 to vector<1x128xi32>
    %30 = arith.muli %28, %29 : vector<1x128xi32>
    %c15_i32_4 = arith.constant 15 : i32
    %31 = vector.broadcast %c15_i32_4 : i32 to vector<1x128xi32>
    %32 = arith.shrui %30, %31 : vector<1x128xi32>
    %33 = arith.xori %30, %32 : vector<1x128xi32>
    %c-2073254261_i32_5 = arith.constant -2073254261 : i32
    %34 = vector.broadcast %c-2073254261_i32_5 : i32 to vector<1x128xi32>
    %35 = arith.muli %33, %34 : vector<1x128xi32>
    %c16_i32_6 = arith.constant 16 : i32
    %36 = vector.broadcast %c16_i32_6 : i32 to vector<1x128xi32>
    %37 = arith.shrui %35, %36 : vector<1x128xi32>
    %38 = arith.xori %35, %37 : vector<1x128xi32>
    %c8_i32 = arith.constant 8 : i32
    %39 = vector.broadcast %c8_i32 : i32 to vector<1x128xi32>
    %40 = arith.shrui %38, %39 : vector<1x128xi32>
    %41 = arith.sitofp %40 : vector<1x128xi32> to vector<1x128xf32>
    %cst = arith.constant 5.96046448E-8 : f32
    %42 = vector.broadcast %cst : f32 to vector<1x128xf32>
    %43 = arith.mulf %41, %42 : vector<1x128xf32>
    %c-1640531527_i32_7 = arith.constant -1640531527 : i32
    %44 = vector.broadcast %c-1640531527_i32_7 : i32 to vector<1x128xi32>
    %45 = arith.muli %4, %44 : vector<1x128xi32>
    %46 = vector.broadcast %0 : i32 to vector<1x128xi32>
    %47 = arith.addi %45, %46 : vector<1x128xi32>
    %c-2048144789_i32 = arith.constant -2048144789 : i32
    %48 = vector.broadcast %c-2048144789_i32 : i32 to vector<1x128xi32>
    %49 = arith.addi %47, %48 : vector<1x128xi32>
    %c16_i32_8 = arith.constant 16 : i32
    %50 = vector.broadcast %c16_i32_8 : i32 to vector<1x128xi32>
    %51 = arith.shrui %49, %50 : vector<1x128xi32>
    %52 = arith.xori %49, %51 : vector<1x128xi32>
    %c2146121005_i32_9 = arith.constant 2146121005 : i32
    %53 = vector.broadcast %c2146121005_i32_9 : i32 to vector<1x128xi32>
    %54 = arith.muli %52, %53 : vector<1x128xi32>
    %c15_i32_10 = arith.constant 15 : i32
    %55 = vector.broadcast %c15_i32_10 : i32 to vector<1x128xi32>
    %56 = arith.shrui %54, %55 : vector<1x128xi32>
    %57 = arith.xori %54, %56 : vector<1x128xi32>
    %c-2073254261_i32_11 = arith.constant -2073254261 : i32
    %58 = vector.broadcast %c-2073254261_i32_11 : i32 to vector<1x128xi32>
    %59 = arith.muli %57, %58 : vector<1x128xi32>
    %c16_i32_12 = arith.constant 16 : i32
    %60 = vector.broadcast %c16_i32_12 : i32 to vector<1x128xi32>
    %61 = arith.shrui %59, %60 : vector<1x128xi32>
    %62 = arith.xori %59, %61 : vector<1x128xi32>
    %c1_i32 = arith.constant 1 : i32
    %63 = vector.broadcast %c1_i32 : i32 to vector<1x128xi32>
    %64 = arith.xori %62, %63 : vector<1x128xi32>
    %c16_i32_13 = arith.constant 16 : i32
    %65 = vector.broadcast %c16_i32_13 : i32 to vector<1x128xi32>
    %66 = arith.shrui %64, %65 : vector<1x128xi32>
    %67 = arith.xori %64, %66 : vector<1x128xi32>
    %c2146121005_i32_14 = arith.constant 2146121005 : i32
    %68 = vector.broadcast %c2146121005_i32_14 : i32 to vector<1x128xi32>
    %69 = arith.muli %67, %68 : vector<1x128xi32>
    %c15_i32_15 = arith.constant 15 : i32
    %70 = vector.broadcast %c15_i32_15 : i32 to vector<1x128xi32>
    %71 = arith.shrui %69, %70 : vector<1x128xi32>
    %72 = arith.xori %69, %71 : vector<1x128xi32>
    %c-2073254261_i32_16 = arith.constant -2073254261 : i32
    %73 = vector.broadcast %c-2073254261_i32_16 : i32 to vector<1x128xi32>
    %74 = arith.muli %72, %73 : vector<1x128xi32>
    %c16_i32_17 = arith.constant 16 : i32
    %75 = vector.broadcast %c16_i32_17 : i32 to vector<1x128xi32>
    %76 = arith.shrui %74, %75 : vector<1x128xi32>
    %77 = arith.xori %74, %76 : vector<1x128xi32>
    %c8_i32_18 = arith.constant 8 : i32
    %78 = vector.broadcast %c8_i32_18 : i32 to vector<1x128xi32>
    %79 = arith.shrui %77, %78 : vector<1x128xi32>
    %80 = arith.sitofp %79 : vector<1x128xi32> to vector<1x128xf32>
    %cst_19 = arith.constant 8388607.5 : f32
    %81 = vector.broadcast %cst_19 : f32 to vector<1x128xf32>
    %82 = arith.subf %80, %81 : vector<1x128xf32>
    %cst_20 = arith.constant 1.1920929E-7 : f32
    %83 = vector.broadcast %cst_20 : f32 to vector<1x128xf32>
    %84 = arith.mulf %82, %83 : vector<1x128xf32>
    %cst_21 = arith.constant 1.000000e+00 : f32
    %85 = vector.broadcast %cst_21 : f32 to vector<1x128xf32>
    %86 = arith.subf %85, %84 : vector<1x128xf32>
    %cst_22 = arith.constant 1.000000e+00 : f32
    %87 = vector.broadcast %cst_22 : f32 to vector<1x128xf32>
    %88 = arith.addf %87, %84 : vector<1x128xf32>
    %89 = arith.mulf %86, %88 : vector<1x128xf32>
    %90 = math.log %89 : vector<1x128xf32>
    %cst_23 = arith.constant 0.000000e+00 : f32
    %91 = vector.broadcast %cst_23 : f32 to vector<1x128xf32>
    %92 = arith.subf %91, %90 : vector<1x128xf32>
    %cst_24 = arith.constant 2.500000e+00 : f32
    %93 = vector.broadcast %cst_24 : f32 to vector<1x128xf32>
    %94 = arith.subf %92, %93 : vector<1x128xf32>
    %cst_25 = arith.constant 2.81022636E-8 : f32
    %95 = vector.broadcast %cst_25 : f32 to vector<1x128xf32>
    %96 = arith.mulf %95, %94 : vector<1x128xf32>
    %cst_26 = arith.constant 3.43273939E-7 : f32
    %97 = vector.broadcast %cst_26 : f32 to vector<1x128xf32>
    %98 = arith.addf %97, %96 : vector<1x128xf32>
    %99 = arith.mulf %98, %94 : vector<1x128xf32>
    %cst_27 = arith.constant -3.5233877E-6 : f32
    %100 = vector.broadcast %cst_27 : f32 to vector<1x128xf32>
    %101 = arith.addf %100, %99 : vector<1x128xf32>
    %102 = arith.mulf %101, %94 : vector<1x128xf32>
    %cst_28 = arith.constant -4.39150654E-6 : f32
    %103 = vector.broadcast %cst_28 : f32 to vector<1x128xf32>
    %104 = arith.addf %103, %102 : vector<1x128xf32>
    %105 = arith.mulf %104, %94 : vector<1x128xf32>
    %cst_29 = arith.constant 2.1858087E-4 : f32
    %106 = vector.broadcast %cst_29 : f32 to vector<1x128xf32>
    %107 = arith.addf %106, %105 : vector<1x128xf32>
    %108 = arith.mulf %107, %94 : vector<1x128xf32>
    %cst_30 = arith.constant -0.00125372503 : f32
    %109 = vector.broadcast %cst_30 : f32 to vector<1x128xf32>
    %110 = arith.addf %109, %108 : vector<1x128xf32>
    %111 = arith.mulf %110, %94 : vector<1x128xf32>
    %cst_31 = arith.constant -0.00417768164 : f32
    %112 = vector.broadcast %cst_31 : f32 to vector<1x128xf32>
    %113 = arith.addf %112, %111 : vector<1x128xf32>
    %114 = arith.mulf %113, %94 : vector<1x128xf32>
    %cst_32 = arith.constant 0.246640727 : f32
    %115 = vector.broadcast %cst_32 : f32 to vector<1x128xf32>
    %116 = arith.addf %115, %114 : vector<1x128xf32>
    %117 = arith.mulf %116, %94 : vector<1x128xf32>
    %cst_33 = arith.constant 1.50140941 : f32
    %118 = vector.broadcast %cst_33 : f32 to vector<1x128xf32>
    %119 = arith.addf %118, %117 : vector<1x128xf32>
    %120 = math.sqrt %92 : vector<1x128xf32>
    %cst_34 = arith.constant 3.000000e+00 : f32
    %121 = vector.broadcast %cst_34 : f32 to vector<1x128xf32>
    %122 = arith.subf %120, %121 : vector<1x128xf32>
    %cst_35 = arith.constant -2.00214257E-4 : f32
    %123 = vector.broadcast %cst_35 : f32 to vector<1x128xf32>
    %124 = arith.mulf %123, %122 : vector<1x128xf32>
    %cst_36 = arith.constant 1.00950558E-4 : f32
    %125 = vector.broadcast %cst_36 : f32 to vector<1x128xf32>
    %126 = arith.addf %125, %124 : vector<1x128xf32>
    %127 = arith.mulf %126, %122 : vector<1x128xf32>
    %cst_37 = arith.constant 0.00134934322 : f32
    %128 = vector.broadcast %cst_37 : f32 to vector<1x128xf32>
    %129 = arith.addf %128, %127 : vector<1x128xf32>
    %130 = arith.mulf %129, %122 : vector<1x128xf32>
    %cst_38 = arith.constant -0.00367342844 : f32
    %131 = vector.broadcast %cst_38 : f32 to vector<1x128xf32>
    %132 = arith.addf %131, %130 : vector<1x128xf32>
    %133 = arith.mulf %132, %122 : vector<1x128xf32>
    %cst_39 = arith.constant 0.00573950773 : f32
    %134 = vector.broadcast %cst_39 : f32 to vector<1x128xf32>
    %135 = arith.addf %134, %133 : vector<1x128xf32>
    %136 = arith.mulf %135, %122 : vector<1x128xf32>
    %cst_40 = arith.constant -0.0076224613 : f32
    %137 = vector.broadcast %cst_40 : f32 to vector<1x128xf32>
    %138 = arith.addf %137, %136 : vector<1x128xf32>
    %139 = arith.mulf %138, %122 : vector<1x128xf32>
    %cst_41 = arith.constant 0.00943887047 : f32
    %140 = vector.broadcast %cst_41 : f32 to vector<1x128xf32>
    %141 = arith.addf %140, %139 : vector<1x128xf32>
    %142 = arith.mulf %141, %122 : vector<1x128xf32>
    %cst_42 = arith.constant 1.00167406 : f32
    %143 = vector.broadcast %cst_42 : f32 to vector<1x128xf32>
    %144 = arith.addf %143, %142 : vector<1x128xf32>
    %145 = arith.mulf %144, %122 : vector<1x128xf32>
    %cst_43 = arith.constant 2.83297682 : f32
    %146 = vector.broadcast %cst_43 : f32 to vector<1x128xf32>
    %147 = arith.addf %146, %145 : vector<1x128xf32>
    %cst_44 = arith.constant 5.000000e+00 : f32
    %148 = vector.broadcast %cst_44 : f32 to vector<1x128xf32>
    %149 = arith.cmpf olt, %92, %148 : vector<1x128xf32>
    %150 = arith.select %149, %119, %147 : vector<1x128xi1>, vector<1x128xf32>
    %151 = arith.mulf %150, %84 : vector<1x128xf32>
    %cst_45 = arith.constant 1.41421354 : f32
    %152 = vector.broadcast %cst_45 : f32 to vector<1x128xf32>
    %153 = arith.mulf %152, %151 : vector<1x128xf32>
    %c0_46 = arith.constant 0 : index
    %c0_47 = arith.constant 0 : index
    %154 = vector.load %arg2[%c0_46, %c0_47] : memref<2x128xf32, #tpu.memory_space<vmem>>, vector<1x128xf32>
    tpu.vector_store %arg2[%c0_46, %c0_47], %43 {strides = array<i32>} : memref<2x128xf32, #tpu.memory_space<vmem>>, vector<1x128xf32>,
    %c1 = arith.constant 1 : index
    %c0_48 = arith.constant 0 : index
    %155 = vector.load %arg2[%c1, %c0_48] : memref<2x128xf32, #tpu.memory_space<vmem>>, vector<1x128xf32>
    tpu.vector_store %arg2[%c1, %c0_48], %153 {strides = array<i32>} : memref<2x128xf32, #tpu.memory_space<vmem>>, vector<1x128xf32>,
    return
  }
  func.func @transform_0(%arg0: i32) -> i32 {
    %c0_i32 = arith.constant 0 : i32
    %c0_i32_0 = arith.constant 0 : i32
    return %c0_i32 : i32
  }
  func.func @transform_1(%arg0: i32) -> (i32, i32) {
    %c0_i32 = arith.constant 0 : i32
    %c0_i32_0 = arith.constant 0 : i32
    return %c0_i32, %arg0 : i32, i32
  }
}

</mosaic_0001>

<llo_original>
// kernel: tpu_custom_call.1
$region0: #{tpu_custom_call.1}
  #allocation0 [shape = 'u32[]', space=smem, size = 0x4, offset = 0x4, fixed_abs, tag = 'smem constant byte address 0x4 - core index']
  #allocation1 [shape = 'u32[144,128]{1,0:T(1,128)}', space=vmem, size = 0x12000, scoped, tag = 'internal scratch']
  #allocation2 [shape = 's32[1]{0:T(128)S(6)}', space=smem, size = 0x200, scoped, tag = 'scoped memory for tpu_custom_call.1']
  %s0 = inlined_call_operand.<no memory space> [shape: s32[1], index: 0, kind: input, shape index: {}]
  %s1 = inlined_call_operand.hbm [shape: f32[2,128], index: 1, kind: output, shape index: {}]
  %s2 = sld [smem:[#allocation0]]
  $region14: #{tpu_custom_call.1} parent=0
    _
  %s4 = ssub.s32 1, %s2
  %s5 = scalar_select 0, %s4, %s2
  %6 = sst [smem:[#allocation2]] %s0
  $region1: #{tpu_custom_call.1} parent=0
    #allocation3 [shape = 'u8[1024]{0}', space=vmem, size = 0x400, scoped, tag = 'output window, operand 0, single buffered']
    #allocation4 [shape = 's32[1]{0}', space=sflag, size = 0x4, scoped, tag = 'scoped memory for tpu_custom_call.1']
    %7 = vsyncpa [#allocation4], 0
    // Predicated region
    $region2: #{tpu_custom_call.1} parent=1 // pred_check
      _
    $region3: #{tpu_custom_call.1} parent=1 // pred_check_branch
      %9 = sbr.rel (0) target = $region5
    $region4: #{tpu_custom_call.1} parent=1 // pred_region
      _
    $region5: #{tpu_custom_call.1} parent=1 // pred_fallthru
      _
    %s10 = sld [smem:[#allocation2]]
    %v11 = vlaneseq
    %v12 = vand.u32 %v11, 127
    %s13 = smul.u32 0, 128
    %v14 = vstv %s13
    %v15 = vadd.s32 %v12, %v14
    %v16 = vmul.u32 %v15, 2654435769
    %v17 = vstv %s10
    %v18 = vadd.s32 %v16, %v17
    %v19 = vshrl.u32 %v18, 16
    %v20 = vxor.u32 %v18, %v19
    %v21 = vmul.u32 %v20, 2146121005
    %v22 = vshrl.u32 %v21, 15
    %v23 = vxor.u32 %v21, %v22
    %v24 = vmul.u32 %v23, 2221713035
    %v25 = vshrl.u32 %v24, 16
    %v26 = vxor.u32 %v24, %v25
    %v27 = vshrl.u32 %v26, 16
    %v28 = vxor.u32 %v26, %v27
    %v29 = vmul.u32 %v28, 2146121005
    %v30 = vshrl.u32 %v29, 15
    %v31 = vxor.u32 %v29, %v30
    %v32 = vmul.u32 %v31, 2221713035
    %v33 = vshrl.u32 %v32, 16
    %v34 = vxor.u32 %v32, %v33
    %v35 = vshrl.u32 %v34, 8
    %v36 = vcvt.s32.f32 %v35
    %v37 = vmul.f32 %v36, 5.9604645e-08
    %v38 = vadd.s32 %v18, 2246822507
    %v39 = vshrl.u32 %v38, 16
    %v40 = vxor.u32 %v38, %v39
    %v41 = vmul.u32 %v40, 2146121005
    %v42 = vshrl.u32 %v41, 15
    %v43 = vxor.u32 %v41, %v42
    %v44 = vmul.u32 %v43, 2221713035
    %v45 = vshrl.u32 %v44, 16
    %v46 = vxor.u32 %v44, %v45
    %v47 = vxor.u32 %v46, 1
    %v48 = vshrl.u32 %v47, 16
    %v49 = vxor.u32 %v47, %v48
    %v50 = vmul.u32 %v49, 2146121005
    %v51 = vshrl.u32 %v50, 15
    %v52 = vxor.u32 %v50, %v51
    %v53 = vmul.u32 %v52, 2221713035
    %v54 = vshrl.u32 %v53, 16
    %v55 = vxor.u32 %v53, %v54
    %v56 = vshrl.u32 %v55, 8
    %v57 = vcvt.s32.f32 %v56
    %v58 = vsub.f32 %v57, 8388607.5
    %v59 = vmul.f32 %v58, 1.1920929e-07
    %v60 = vsub.f32 1.0, %v59
    %v61 = vadd.f32 %v59, 1.0
    %v62 = vmul.f32 %v60, %v61
    %v63 = vlog2.pop %v62
    %v64 = vmul.f32 %v63, 0.6931472
    %v65 = vsub.f32 0.0, %v64
    %v66 = vsub.f32 %v65, 2.5
    %v67 = vmul.f32 %v66, 2.8102264e-08
    %v68 = vadd.f32 %v67, 3.4327394e-07
    %v69 = vmul.f32 %v68, %v66
    %v70 = vadd.f32 %v69, -3.5233877e-06
    %v71 = vmul.f32 %v70, %v66
    %v72 = vadd.f32 %v71, -4.3915065e-06
    %v73 = vmul.f32 %v72, %v66
    %v74 = vadd.f32 %v73, 0.00021858087
    %v75 = vmul.f32 %v74, %v66
    %v76 = vadd.f32 %v75, -0.001253725
    %v77 = vmul.f32 %v76, %v66
    %v78 = vadd.f32 %v77, -0.0041776816
    %v79 = vmul.f32 %v78, %v66
    %v80 = vadd.f32 %v79, 0.24664073
    %v81 = vmul.f32 %v80, %v66
    %v82 = vadd.f32 %v81, 1.5014094
    %v83 = vrsqrt.pop %v65
    %v84 = vmul.f32 %v65, %v83
    %vm85 = vcmp.eq.f32.partialorder %v65, inf
    %v86 = vsel %vm85, %v65, %v84
    %vm87 = vcmp.eq.f32.partialorder %v65, 0.0
    %v88 = vand.u32 %v65, 2147483648
    %v89 = vsel %vm87, %v88, %v86
    %v90 = vsub.f32 %v89, 3.0
    %v91 = vmul.f32 %v90, -0.00020021426
    %v92 = vadd.f32 %v91, 0.00010095056
    %v93 = vmul.f32 %v92, %v90
    %v94 = vadd.f32 %v93, 0.0013493432
    %v95 = vmul.f32 %v94, %v90
    %v96 = vadd.f32 %v95, -0.0036734284
    %v97 = vmul.f32 %v96, %v90
    %v98 = vadd.f32 %v97, 0.0057395077
    %v99 = vmul.f32 %v98, %v90
    %v100 = vadd.f32 %v99, -0.0076224613
    %v101 = vmul.f32 %v100, %v90
    %v102 = vadd.f32 %v101, 0.0094388705
    %v103 = vmul.f32 %v102, %v90
    %v104 = vadd.f32 %v103, 1.001674
    %v105 = vmul.f32 %v104, %v90
    %v106 = vadd.f32 %v105, 2.8329768
    %vm107 = vcmp.lt.f32.partialorder %v65, 5.0
    %v108 = vsel %vm107, %v82, %v106
    %v109 = vmul.f32 %v108, %v59
    %v110 = vmul.f32 %v109, 1.4142135
    %111 = vst [vmem:[#allocation3] sm:$0x1] %v37
    %112 = vst [vmem:[#allocation3 + $0x1] sm:$0x1] %v110
    // Predicated region
    $region6: #{tpu_custom_call.1} parent=1 // pred_check
      _
    $region7: #{tpu_custom_call.1} parent=1 // pred_check_branch
      %114 = sbr.rel (0) target = $region9
    $region8: #{tpu_custom_call.1} parent=1 // pred_region
      %s116 = ssub.s32 32, 32
      %117 = vsyncadd [#allocation4], %s116
      %s119 = sshll.u32 [#allocation3], 4
      %s120 = int_to_ptr.vmem [resolvable:$true] %s119
      %122 = dma.vmem_to_hbm [thread:$0]  %s120, 32, %s1, [#allocation4]
    $region9: #{tpu_custom_call.1} parent=1 // pred_fallthru
      _
    // Predicated region
    $region10: #{tpu_custom_call.1} parent=1 // pred_check
      _
    $region11: #{tpu_custom_call.1} parent=1 // pred_check_branch
      %124 = sbr.rel (0) target = $region13
    $region12: #{tpu_custom_call.1} parent=1 // pred_region
      %125 = dma.done [#allocation4], 32
    $region13: #{tpu_custom_call.1} parent=1 // pred_fallthru
      _
    %126 = vsyncpa [#allocation4], 1

</llo_original>
